<compile_context>
chip_gen: v7x
topology: tpu7x:2x2x1
jax: 0.10.0
libtpu: 0.0.40
codegen_flags: <defaults>
</compile_context>

<pallas_src>
import math
import functools

import jax
import jax.numpy as jnp
from jax.experimental import pallas as pl
from jax.experimental.pallas import tpu as pltpu

# ----------------------- problem sizes (LunarLander Rainbow) -------------------
STATE_DIM = 8          # LunarLander observation size
ACTION_DIM = 4         # LunarLander discrete actions
ATOMS = 51             # Rainbow default
HIDDEN = 128
LANE = 128             # per-action lane block (51 valid atoms + 77 pad)
NEG_BIG = -1e30        # softmax mask value for padded atom columns
VMIN, VMAX = -100.0, 100.0
STD_INIT = 0.4
TRAINING = True        # NoisyLinear: training -> weight = mu + sigma * eps
STATE_NORM_ENABLE = False
# TODO(synk): RunningMeanStd class is not provided in the source; state
# normalization (state_norm_enable) is left disabled rather than faked.


def _round_up(x, m):
    return ((x + m - 1) // m) * m


# ----------------------------- Pallas kernel ----------------------------------
def _q_forward_kernel(state_ref, w1_ref, b1_ref, wn_ref, bn_ref,
                      wh_ref, bh_ref, p_ref, *, action_dim, lane):
    x = state_ref[...]                                              # (TB, S)

    # fc1 + ReLU
    h = jnp.dot(x, w1_ref[...], preferred_element_type=jnp.float32) + b1_ref[...]
    h = jnp.maximum(h, 0.0)                                         # (TB, 128)

    # noise1 (NoisyLinear, effective weight/bias computed host-side) + ReLU
    h = jnp.dot(h, wn_ref[...], preferred_element_type=jnp.float32) + bn_ref[...]
    h = jnp.maximum(h, 0.0)                                         # (TB, 128)

    # fused advantage+value head: (TB, (A+1)*128) = [A0|A1|A2|A3|V], 128-aligned
    head = jnp.dot(h, wh_ref[...], preferred_element_type=jnp.float32) + bh_ref[...]

    v = head[:, action_dim * lane:(action_dim + 1) * lane]          # (TB, 128)

    # mean over actions (pad columns are exactly 0, so the mean is unaffected)
    a_mean = head[:, 0:lane]
    for i in range(1, action_dim):
        a_mean = a_mean + head[:, i * lane:(i + 1) * lane]
    a_mean = a_mean * (1.0 / action_dim)                            # (TB, 128)

    # dueling combine + softmax per action on full (TB, 128) lane-aligned tiles.
    # Pad lanes of `v` carry -1e30 so exp() underflows to 0 there.
    for i in range(action_dim):
        q_i = v + head[:, i * lane:(i + 1) * lane] - a_mean         # (TB, 128)
        q_i = q_i - jnp.max(q_i, axis=-1, keepdims=True)
        e = jnp.exp(q_i)
        inv = pl.reciprocal(jnp.sum(e, axis=-1, keepdims=True), approx=False)
        p_ref[:, i * lane:(i + 1) * lane] = e * inv                 # aligned store


def q_forward(state, kernel_params):
    """state: (B, STATE_DIM) f32.  Returns p: (B, ACTION_DIM, ATOMS) f32."""
    B = state.shape[0]
    (w1, b1, wn, bn, wh, bh) = kernel_params

    # pad batch to sublane granularity and pick a batch tile
    B_pad = _round_up(B, 8)
    TB = min(256, B_pad)
    B_pad = _round_up(B_pad, TB)
    if B_pad != B:
        state = jnp.pad(state, ((0, B_pad - B), (0, 0)))

    n_head = (ACTION_DIM + 1) * LANE     # 640
    n_out = ACTION_DIM * LANE            # 512 (lane-dense output slab)

    kernel = functools.partial(_q_forward_kernel,
                               action_dim=ACTION_DIM, lane=LANE)

    out = pl.pallas_call(
        kernel,
        out_shape=jax.ShapeDtypeStruct((B_pad, n_out), jnp.float32),
        grid_spec=pltpu.PrefetchScalarGridSpec(
            num_scalar_prefetch=0,
            grid=(B_pad // TB,),
            in_specs=[
                pl.BlockSpec((TB, STATE_DIM), lambda i: (i, 0)),      # state tile
                pl.BlockSpec((STATE_DIM, HIDDEN), lambda i: (0, 0)),  # w1 (resident)
                pl.BlockSpec((1, HIDDEN), lambda i: (0, 0)),          # b1
                pl.BlockSpec((HIDDEN, HIDDEN), lambda i: (0, 0)),     # wn
                pl.BlockSpec((1, HIDDEN), lambda i: (0, 0)),          # bn
                pl.BlockSpec((HIDDEN, n_head), lambda i: (0, 0)),     # fused head W
                pl.BlockSpec((1, n_head), lambda i: (0, 0)),          # fused head b
            ],
            out_specs=pl.BlockSpec((TB, n_out), lambda i: (i, 0)),
        ),
        compiler_params=pltpu.CompilerParams(
            dimension_semantics=("parallel",)),
    )(state, w1, b1, wn, bn, wh, bh)

    # lane-dense slab -> (B, ACTION_DIM, ATOMS) in the wrapper (layout plumbing)
    p = out.reshape(B_pad, ACTION_DIM, LANE)[:B, :, :ATOMS]
    return p


# ------------------------- parameter construction (glue) ----------------------
def _scale_noise(key, size):
    x = jax.random.normal(key, (size,), dtype=jnp.float32)
    return jnp.sign(x) * jnp.sqrt(jnp.abs(x))


def make_noisy_linear(key, in_features, out_features, training):
    """Returns effective (W^T, b) of the NoisyLinear layer. W^T is (in, out)."""
    k_mu_w, k_mu_b, k_eps_in, k_eps_out = jax.random.split(key, 4)
    std = math.sqrt(3.0 / in_features)
    weight_mu = jax.random.uniform(k_mu_w, (out_features, in_features),
                                   minval=-std, maxval=std, dtype=jnp.float32)
    bias_mu = jax.random.uniform(k_mu_b, (out_features,),
                                 minval=-std, maxval=std, dtype=jnp.float32)
    weight_sigma = jnp.full((out_features, in_features),
                            STD_INIT / math.sqrt(in_features), jnp.float32)
    bias_sigma = jnp.full((out_features,),
                          STD_INIT / math.sqrt(out_features), jnp.float32)
    eps_in = _scale_noise(k_eps_in, in_features)
    eps_out = _scale_noise(k_eps_out, out_features)
    weight_eps = jnp.outer(eps_out, eps_in)
    bias_eps = eps_out
    if training:
        w = weight_mu + weight_sigma * weight_eps
        b = bias_mu + bias_sigma * bias_eps
    else:
        w = weight_mu
        b = bias_mu
    # TODO(synk): noise is sampled once here; the PyTorch module resamples
    # epsilon on reset_noise() per training step.
    return w.T, b.reshape(1, out_features)


def make_params(key):
    k1, k2, k3, k4 = jax.random.split(key, 4)
    # fc1: orthogonal init with relu gain, zero bias
    gain = math.sqrt(2.0)
    w1 = gain * jax.nn.initializers.orthogonal()(k1, (HIDDEN, STATE_DIM), jnp.float32)
    w1 = w1.T                                             # (S, 128)
    b1 = jnp.zeros((1, HIDDEN), jnp.float32)
    wn, bn = make_noisy_linear(k2, HIDDEN, HIDDEN, TRAINING)
    wa, ba = make_noisy_linear(k3, HIDDEN, ACTION_DIM * ATOMS, TRAINING)
    wv, bv = make_noisy_linear(k4, HIDDEN, ATOMS, TRAINING)

    # ---- fused, 128-lane-aligned head: [A0 | A1 | A2 | A3 | V] -> (128, 640)
    n_head = (ACTION_DIM + 1) * LANE
    wh = jnp.zeros((HIDDEN, n_head), jnp.float32)
    bh = jnp.zeros((1, n_head), jnp.float32)
    for i in range(ACTION_DIM):
        wh = wh.at[:, i * LANE:i * LANE + ATOMS].set(wa[:, i * ATOMS:(i + 1) * ATOMS])
        bh = bh.at[:, i * LANE:i * LANE + ATOMS].set(ba[:, i * ATOMS:(i + 1) * ATOMS])
        # advantage pad columns stay 0 so the action-mean is unaffected
    vcol = ACTION_DIM * LANE
    wh = wh.at[:, vcol:vcol + ATOMS].set(wv)
    bh = bh.at[:, vcol:vcol + ATOMS].set(bv)
    bh = bh.at[:, vcol + ATOMS:].set(NEG_BIG)   # mask pad atoms out of the softmax

    kernel_params = (w1, b1, wn, bn, wh, bh)
    ref_params = (w1, b1, wn, bn, wa, ba, wv, bv)
    return kernel_params, ref_params


# -------------------------------- reference ------------------------------------
def q_forward_ref(state, ref_params):
    (w1, b1, wn, bn, wa, ba, wv, bv) = ref_params
    x = jnp.maximum(state @ w1 + b1, 0.0)
    x = jnp.maximum(x @ wn + bn, 0.0)
    a = (x @ wa + ba).reshape(-1, ACTION_DIM, ATOMS)
    v = (x @ wv + bv).reshape(-1, 1, ATOMS)
    q = v + a - a.mean(axis=1, keepdims=True)
    p = jax.nn.softmax(q.reshape(-1, ATOMS), axis=-1)
    return p.reshape(-1, ACTION_DIM, ATOMS)


# ---------------------------------- main ---------------------------------------
if __name__ == "__main__":
    key = jax.random.PRNGKey(0)
    k_params, k_state = jax.random.split(key)
    kernel_params, ref_params = make_params(k_params)

    B = 2
    state = jax.random.normal(k_state, (B, STATE_DIM), dtype=jnp.float32)

    p = q_forward(state, kernel_params)
    p = jax.block_until_ready(p)

    p_ref = q_forward_ref(state, ref_params)
    assert p.shape == (B, ACTION_DIM, ATOMS)
    assert jnp.allclose(p, p_ref, atol=1e-5, rtol=1e-5)
    # distribution sanity: each (batch, action) row sums to 1
    assert jnp.allclose(p.sum(-1), jnp.ones((B, ACTION_DIM)), atol=1e-5)

    print("KERNEL_OK")
</pallas_src>

<mosaic_0001>
module attributes {stable_mosaic.version = 11 : i64} {
  func.func @_q_forward_kernel(%arg0: i32, %arg1: memref<8x8xf32, #tpu.memory_space<vmem>>, %arg2: memref<8x128xf32, #tpu.memory_space<vmem>>, %arg3: memref<1x128xf32, #tpu.memory_space<vmem>>, %arg4: memref<128x128xf32, #tpu.memory_space<vmem>>, %arg5: memref<1x128xf32, #tpu.memory_space<vmem>>, %arg6: memref<128x640xf32, #tpu.memory_space<vmem>>, %arg7: memref<1x640xf32, #tpu.memory_space<vmem>>, %arg8: memref<8x512xf32, #tpu.memory_space<vmem>>) attributes {dimension_semantics = [#tpu.dimension_semantics<parallel>], iteration_bounds = array<i64: 1>, scalar_prefetch = 0 : i64, scratch_operands = 0 : i64, tpu.core_type = #tpu.core_type<tc>, window_params = [{transform_indices = @transform_0, window_bounds = array<i64: 8, 8>}, {pipeline_mode = #tpu.pipeline_mode<synchronous>, transform_indices = @transform_1, window_bounds = array<i64: 8, 128>}, {pipeline_mode = #tpu.pipeline_mode<synchronous>, transform_indices = @transform_2, window_bounds = array<i64: 1, 128>}, {pipeline_mode = #tpu.pipeline_mode<synchronous>, transform_indices = @transform_3, window_bounds = array<i64: 128, 128>}, {pipeline_mode = #tpu.pipeline_mode<synchronous>, transform_indices = @transform_4, window_bounds = array<i64: 1, 128>}, {pipeline_mode = #tpu.pipeline_mode<synchronous>, transform_indices = @transform_5, window_bounds = array<i64: 128, 640>}, {pipeline_mode = #tpu.pipeline_mode<synchronous>, transform_indices = @transform_6, window_bounds = array<i64: 1, 640>}, {transform_indices = @transform_7, window_bounds = array<i64: 8, 512>}]} {
    %c0 = arith.constant 0 : index
    %c0_0 = arith.constant 0 : index
    %0 = vector.load %arg1[%c0, %c0_0] : memref<8x8xf32, #tpu.memory_space<vmem>>, vector<8x8xf32>
    %c0_1 = arith.constant 0 : index
    %c0_2 = arith.constant 0 : index
    %1 = vector.load %arg2[%c0_1, %c0_2] : memref<8x128xf32, #tpu.memory_space<vmem>>, vector<8x128xf32>
    %cst = arith.constant dense<0.000000e+00> : vector<8x128xf32>
    %2 = tpu.matmul %0, %1, %cst {dimension_numbers = #tpu.dot_dimension_numbers<[1], [0], [0], [1], [0, 0, 1, 1], [], []>} : vector<8x8xf32>, vector<8x128xf32>, vector<8x128xf32> -> vector<8x128xf32>
    %c0_3 = arith.constant 0 : index
    %c0_4 = arith.constant 0 : index
    %3 = vector.load %arg3[%c0_3, %c0_4] : memref<1x128xf32, #tpu.memory_space<vmem>>, vector<1x128xf32>
    %4 = vector.broadcast %3 : vector<1x128xf32> to vector<8x128xf32>
    %5 = arith.addf %2, %4 : vector<8x128xf32>
    %cst_5 = arith.constant 0.000000e+00 : f32
    %6 = vector.broadcast %cst_5 : f32 to vector<8x128xf32>
    %7 = arith.maximumf %5, %6 : vector<8x128xf32>
    %c0_6 = arith.constant 0 : index
    %c0_7 = arith.constant 0 : index
    %8 = vector.load %arg4[%c0_6, %c0_7] : memref<128x128xf32, #tpu.memory_space<vmem>>, vector<128x128xf32>
    %cst_8 = arith.constant dense<0.000000e+00> : vector<8x128xf32>
    %9 = tpu.matmul %7, %8, %cst_8 {dimension_numbers = #tpu.dot_dimension_numbers<[1], [0], [0], [1], [0, 0, 1, 1], [], []>} : vector<8x128xf32>, vector<128x128xf32>, vector<8x128xf32> -> vector<8x128xf32>
    %c0_9 = arith.constant 0 : index
    %c0_10 = arith.constant 0 : index
    %10 = vector.load %arg5[%c0_9, %c0_10] : memref<1x128xf32, #tpu.memory_space<vmem>>, vector<1x128xf32>
    %11 = vector.broadcast %10 : vector<1x128xf32> to vector<8x128xf32>
    %12 = arith.addf %9, %11 : vector<8x128xf32>
    %cst_11 = arith.constant 0.000000e+00 : f32
    %13 = vector.broadcast %cst_11 : f32 to vector<8x128xf32>
    %14 = arith.maximumf %12, %13 : vector<8x128xf32>
    %c0_12 = arith.constant 0 : index
    %c0_13 = arith.constant 0 : index
    %15 = vector.load %arg6[%c0_12, %c0_13] : memref<128x640xf32, #tpu.memory_space<vmem>>, vector<128x640xf32>
    %cst_14 = arith.constant dense<0.000000e+00> : vector<8x640xf32>
    %16 = tpu.matmul %14, %15, %cst_14 {dimension_numbers = #tpu.dot_dimension_numbers<[1], [0], [0], [1], [0, 0, 1, 1], [], []>} : vector<8x128xf32>, vector<128x640xf32>, vector<8x640xf32> -> vector<8x640xf32>
    %c0_15 = arith.constant 0 : index
    %c0_16 = arith.constant 0 : index
    %17 = vector.load %arg7[%c0_15, %c0_16] : memref<1x640xf32, #tpu.memory_space<vmem>>, vector<1x640xf32>
    %18 = vector.broadcast %17 : vector<1x640xf32> to vector<8x640xf32>
    %19 = arith.addf %16, %18 : vector<8x640xf32>
    %20 = vector.extract_strided_slice %19 {offsets = [0, 512], sizes = [8, 128], strides = [1, 1]} : vector<8x640xf32> to vector<8x128xf32>
    %21 = vector.extract_strided_slice %19 {offsets = [0, 0], sizes = [8, 128], strides = [1, 1]} : vector<8x640xf32> to vector<8x128xf32>
    %22 = vector.extract_strided_slice %19 {offsets = [0, 128], sizes = [8, 128], strides = [1, 1]} : vector<8x640xf32> to vector<8x128xf32>
    %23 = arith.addf %21, %22 : vector<8x128xf32>
    %24 = vector.extract_strided_slice %19 {offsets = [0, 256], sizes = [8, 128], strides = [1, 1]} : vector<8x640xf32> to vector<8x128xf32>
    %25 = arith.addf %23, %24 : vector<8x128xf32>
    %26 = vector.extract_strided_slice %19 {offsets = [0, 384], sizes = [8, 128], strides = [1, 1]} : vector<8x640xf32> to vector<8x128xf32>
    %27 = arith.addf %25, %26 : vector<8x128xf32>
    %cst_17 = arith.constant 2.500000e-01 : f32
    %28 = vector.broadcast %cst_17 : f32 to vector<8x128xf32>
    %29 = arith.mulf %27, %28 : vector<8x128xf32>
    %30 = vector.extract_strided_slice %19 {offsets = [0, 0], sizes = [8, 128], strides = [1, 1]} : vector<8x640xf32> to vector<8x128xf32>
    %31 = arith.addf %20, %30 : vector<8x128xf32>
    %32 = arith.subf %31, %29 : vector<8x128xf32>
    %cst_18 = arith.constant dense<0xFF800000> : vector<8xf32>
    %33 = vector.multi_reduction <maximumf>, %32, %cst_18 [1] : vector<8x128xf32> to vector<8xf32>
    %34 = vector.shape_cast %33 : vector<8xf32> to vector<8x1xf32>
    %35 = vector.broadcast %34 : vector<8x1xf32> to vector<8x128xf32>
    %36 = arith.subf %32, %35 : vector<8x128xf32>
    %37 = math.exp %36 : vector<8x128xf32>
    %cst_19 = arith.constant dense<0.000000e+00> : vector<8xf32>
    %38 = vector.multi_reduction <add>, %37, %cst_19 [1] : vector<8x128xf32> to vector<8xf32>
    %39 = vector.shape_cast %38 : vector<8xf32> to vector<8x1xf32>
    %40 = tpu.reciprocal %39 : vector<8x1xf32> -> vector<8x1xf32>
    %41 = vector.broadcast %40 : vector<8x1xf32> to vector<8x128xf32>
    %42 = arith.mulf %37, %41 : vector<8x128xf32>
    %c0_20 = arith.constant 0 : index
    %c0_21 = arith.constant 0 : index
    %43 = vector.load %arg8[%c0_20, %c0_21] : memref<8x512xf32, #tpu.memory_space<vmem>>, vector<8x128xf32>
    tpu.vector_store %arg8[%c0_20, %c0_21], %42 {strides = array<i32>} : memref<8x512xf32, #tpu.memory_space<vmem>>, vector<8x128xf32>,
    %44 = vector.extract_strided_slice %19 {offsets = [0, 128], sizes = [8, 128], strides = [1, 1]} : vector<8x640xf32> to vector<8x128xf32>
    %45 = arith.addf %20, %44 : vector<8x128xf32>
    %46 = arith.subf %45, %29 : vector<8x128xf32>
    %cst_22 = arith.constant dense<0xFF800000> : vector<8xf32>
    %47 = vector.multi_reduction <maximumf>, %46, %cst_22 [1] : vector<8x128xf32> to vector<8xf32>
    %48 = vector.shape_cast %47 : vector<8xf32> to vector<8x1xf32>
    %49 = vector.broadcast %48 : vector<8x1xf32> to vector<8x128xf32>
    %50 = arith.subf %46, %49 : vector<8x128xf32>
    %51 = math.exp %50 : vector<8x128xf32>
    %cst_23 = arith.constant dense<0.000000e+00> : vector<8xf32>
    %52 = vector.multi_reduction <add>, %51, %cst_23 [1] : vector<8x128xf32> to vector<8xf32>
    %53 = vector.shape_cast %52 : vector<8xf32> to vector<8x1xf32>
    %54 = tpu.reciprocal %53 : vector<8x1xf32> -> vector<8x1xf32>
    %55 = vector.broadcast %54 : vector<8x1xf32> to vector<8x128xf32>
    %56 = arith.mulf %51, %55 : vector<8x128xf32>
    %c0_24 = arith.constant 0 : index
    %c128 = arith.constant 128 : index
    %57 = vector.load %arg8[%c0_24, %c128] : memref<8x512xf32, #tpu.memory_space<vmem>>, vector<8x128xf32>
    tpu.vector_store %arg8[%c0_24, %c128], %56 {strides = array<i32>} : memref<8x512xf32, #tpu.memory_space<vmem>>, vector<8x128xf32>,
    %58 = vector.extract_strided_slice %19 {offsets = [0, 256], sizes = [8, 128], strides = [1, 1]} : vector<8x640xf32> to vector<8x128xf32>
    %59 = arith.addf %20, %58 : vector<8x128xf32>
    %60 = arith.subf %59, %29 : vector<8x128xf32>
    %cst_25 = arith.constant dense<0xFF800000> : vector<8xf32>
    %61 = vector.multi_reduction <maximumf>, %60, %cst_25 [1] : vector<8x128xf32> to vector<8xf32>
    %62 = vector.shape_cast %61 : vector<8xf32> to vector<8x1xf32>
    %63 = vector.broadcast %62 : vector<8x1xf32> to vector<8x128xf32>
    %64 = arith.subf %60, %63 : vector<8x128xf32>
    %65 = math.exp %64 : vector<8x128xf32>
    %cst_26 = arith.constant dense<0.000000e+00> : vector<8xf32>
    %66 = vector.multi_reduction <add>, %65, %cst_26 [1] : vector<8x128xf32> to vector<8xf32>
    %67 = vector.shape_cast %66 : vector<8xf32> to vector<8x1xf32>
    %68 = tpu.reciprocal %67 : vector<8x1xf32> -> vector<8x1xf32>
    %69 = vector.broadcast %68 : vector<8x1xf32> to vector<8x128xf32>
    %70 = arith.mulf %65, %69 : vector<8x128xf32>
    %c0_27 = arith.constant 0 : index
    %c256 = arith.constant 256 : index
    %71 = vector.load %arg8[%c0_27, %c256] : memref<8x512xf32, #tpu.memory_space<vmem>>, vector<8x128xf32>
    tpu.vector_store %arg8[%c0_27, %c256], %70 {strides = array<i32>} : memref<8x512xf32, #tpu.memory_space<vmem>>, vector<8x128xf32>,
    %72 = vector.extract_strided_slice %19 {offsets = [0, 384], sizes = [8, 128], strides = [1, 1]} : vector<8x640xf32> to vector<8x128xf32>
    %73 = arith.addf %20, %72 : vector<8x128xf32>
    %74 = arith.subf %73, %29 : vector<8x128xf32>
    %cst_28 = arith.constant dense<0xFF800000> : vector<8xf32>
    %75 = vector.multi_reduction <maximumf>, %74, %cst_28 [1] : vector<8x128xf32> to vector<8xf32>
    %76 = vector.shape_cast %75 : vector<8xf32> to vector<8x1xf32>
    %77 = vector.broadcast %76 : vector<8x1xf32> to vector<8x128xf32>
    %78 = arith.subf %74, %77 : vector<8x128xf32>
    %79 = math.exp %78 : vector<8x128xf32>
    %cst_29 = arith.constant dense<0.000000e+00> : vector<8xf32>
    %80 = vector.multi_reduction <add>, %79, %cst_29 [1] : vector<8x128xf32> to vector<8xf32>
    %81 = vector.shape_cast %80 : vector<8xf32> to vector<8x1xf32>
    %82 = tpu.reciprocal %81 : vector<8x1xf32> -> vector<8x1xf32>
    %83 = vector.broadcast %82 : vector<8x1xf32> to vector<8x128xf32>
    %84 = arith.mulf %79, %83 : vector<8x128xf32>
    %c0_30 = arith.constant 0 : index
    %c384 = arith.constant 384 : index
    %85 = vector.load %arg8[%c0_30, %c384] : memref<8x512xf32, #tpu.memory_space<vmem>>, vector<8x128xf32>
    tpu.vector_store %arg8[%c0_30, %c384], %84 {strides = array<i32>} : memref<8x512xf32, #tpu.memory_space<vmem>>, vector<8x128xf32>,
    return
  }
  func.func @transform_0(%arg0: i32) -> (i32, i32) {
    %c0_i32 = arith.constant 0 : i32
    %c0_i32_0 = arith.constant 0 : i32
    return %arg0, %c0_i32 : i32, i32
  }
  func.func @transform_1(%arg0: i32) -> (i32, i32) {
    %c0_i32 = arith.constant 0 : i32
    %c0_i32_0 = arith.constant 0 : i32
    %c0_i32_1 = arith.constant 0 : i32
    return %c0_i32, %c0_i32_0 : i32, i32
  }
  func.func @transform_2(%arg0: i32) -> (i32, i32) {
    %c0_i32 = arith.constant 0 : i32
    %c0_i32_0 = arith.constant 0 : i32
    %c0_i32_1 = arith.constant 0 : i32
    return %c0_i32, %c0_i32_0 : i32, i32
  }
  func.func @transform_3(%arg0: i32) -> (i32, i32) {
    %c0_i32 = arith.constant 0 : i32
    %c0_i32_0 = arith.constant 0 : i32
    %c0_i32_1 = arith.constant 0 : i32
    return %c0_i32, %c0_i32_0 : i32, i32
  }
  func.func @transform_4(%arg0: i32) -> (i32, i32) {
    %c0_i32 = arith.constant 0 : i32
    %c0_i32_0 = arith.constant 0 : i32
    %c0_i32_1 = arith.constant 0 : i32
    return %c0_i32, %c0_i32_0 : i32, i32
  }
  func.func @transform_5(%arg0: i32) -> (i32, i32) {
    %c0_i32 = arith.constant 0 : i32
    %c0_i32_0 = arith.constant 0 : i32
    %c0_i32_1 = arith.constant 0 : i32
    return %c0_i32, %c0_i32_0 : i32, i32
  }
  func.func @transform_6(%arg0: i32) -> (i32, i32) {
    %c0_i32 = arith.constant 0 : i32
    %c0_i32_0 = arith.constant 0 : i32
    %c0_i32_1 = arith.constant 0 : i32
    return %c0_i32, %c0_i32_0 : i32, i32
  }
  func.func @transform_7(%arg0: i32) -> (i32, i32) {
    %c0_i32 = arith.constant 0 : i32
    %c0_i32_0 = arith.constant 0 : i32
    return %arg0, %c0_i32 : i32, i32
  }
}

</mosaic_0001>

<llo_original>
// kernel: tpu_custom_call.1
$region0: #{tpu_custom_call.1}
  #allocation0 [shape = 'u32[]', space=smem, size = 0x4, offset = 0x4, fixed_abs, tag = 'smem constant byte address 0x4 - core index']
  #allocation1 [shape = 'u32[144,128]{1,0:T(1,128)}', space=vmem, size = 0x12000, scoped, tag = 'internal scratch']
  %s0 = inlined_call_operand.hbm [shape: f32[8,8], index: 0, kind: input, shape index: {}]
  %s1 = inlined_call_operand.hbm [shape: f32[8,128], index: 1, kind: input, shape index: {}]
  %s2 = inlined_call_operand.vmem [shape: f32[1,128], index: 2, kind: input, shape index: {}]
  %s3 = inlined_call_operand.hbm [shape: f32[128,128], index: 3, kind: input, shape index: {}]
  %s4 = inlined_call_operand.vmem [shape: f32[1,128], index: 4, kind: input, shape index: {}]
  %s5 = inlined_call_operand.hbm [shape: f32[128,640], index: 5, kind: input, shape index: {}]
  %s6 = inlined_call_operand.vmem [shape: f32[1,640], index: 6, kind: input, shape index: {}]
  %s7 = inlined_call_operand.hbm [shape: f32[8,512], index: 7, kind: output, shape index: {}]
  %s8 = sld [smem:[#allocation0]]
  $region54: #{tpu_custom_call.1} parent=0
    _
  %s10 = ssub.s32 1, %s8
  %s11 = scalar_select 0, %s10, %s8
  $region1: #{tpu_custom_call.1} parent=0
    #allocation2 [shape = 'u8[4096]{0}', space=vmem, size = 0x1000, scoped, tag = 'input window, operand 0, single buffered']
    #allocation3 [shape = 's32[1]{0}', space=sflag, size = 0x4, scoped, tag = 'scoped memory for tpu_custom_call.1']
    #allocation4 [shape = 's32[1]{0}', space=sflag, size = 0x4, scoped, tag = 'scoped memory for tpu_custom_call.1']
    #allocation5 [shape = 'u8[4096]{0}', space=vmem, size = 0x1000, scoped, tag = 'input window, operand 1, single buffered']
    #allocation6 [shape = 's32[1]{0}', space=sflag, size = 0x4, scoped, tag = 'scoped memory for tpu_custom_call.1']
    #allocation7 [shape = 'u8[65536]{0}', space=vmem, size = 0x10000, scoped, tag = 'input window, operand 3, single buffered']
    #allocation8 [shape = 'u8[327680]{0}', space=vmem, size = 0x50000, scoped, tag = 'input window, operand 5, single buffered']
    #allocation9 [shape = 's32[1]{0}', space=sflag, size = 0x4, scoped, tag = 'scoped memory for tpu_custom_call.1']
    #allocation10 [shape = 'u8[16384]{0}', space=vmem, size = 0x4000, scoped, tag = 'output window, operand 0, single buffered']
    %12 = vsyncpa [#allocation3], 0
    %13 = vsyncpa [#allocation6], 0
    %14 = vsyncpa [#allocation9], 0
    %15 = vsyncpa [#allocation4], 0
    // Predicated region
    $region2: #{tpu_custom_call.1} parent=1 // pred_check
      _
    $region3: #{tpu_custom_call.1} parent=1 // pred_check_branch
      %17 = sbr.rel (0) target = $region5
    $region4: #{tpu_custom_call.1} parent=1 // pred_region
      %s19 = ssub.s32 128, 128
      %20 = vsyncadd [#allocation3], %s19
      %s22 = sshll.u32 [#allocation2], 4
      %s23 = int_to_ptr.vmem [resolvable:$true] %s22
      %25 = dma.hbm_to_vmem [thread:$0]  %s0, 128, %s23, [#allocation3]
    $region5: #{tpu_custom_call.1} parent=1 // pred_fallthru
      _
    // Predicated region
    $region6: #{tpu_custom_call.1} parent=1 // pred_check
      _
    $region7: #{tpu_custom_call.1} parent=1 // pred_check_branch
      %27 = sbr.rel (0) target = $region9
    $region8: #{tpu_custom_call.1} parent=1 // pred_region
      %s29 = ssub.s32 128, 128
      %30 = vsyncadd [#allocation6], %s29
      %s32 = sshll.u32 [#allocation5], 4
      %s33 = int_to_ptr.vmem [resolvable:$true] %s32
      %35 = dma.hbm_to_vmem [thread:$0]  %s1, 128, %s33, [#allocation6]
    $region9: #{tpu_custom_call.1} parent=1 // pred_fallthru
      _
    // Predicated region
    $region10: #{tpu_custom_call.1} parent=1 // pred_check
      _
    $region11: #{tpu_custom_call.1} parent=1 // pred_check_branch
      %37 = sbr.rel (0) target = $region13
    $region12: #{tpu_custom_call.1} parent=1 // pred_region
      _
    $region13: #{tpu_custom_call.1} parent=1 // pred_fallthru
      _
    // Predicated region
    $region14: #{tpu_custom_call.1} parent=1 // pred_check
      _
    $region15: #{tpu_custom_call.1} parent=1 // pred_check_branch
      %39 = sbr.rel (0) target = $region17
    $region16: #{tpu_custom_call.1} parent=1 // pred_region
      %s41 = ssub.s32 2048, 2048
      %42 = vsyncadd [#allocation6], %s41
      %s43 = sshll.u32 [#allocation7], 4
      %s44 = int_to_ptr.vmem [resolvable:$true] %s43
      %49 = dma.hbm_to_vmem [thread:$0]  %s3, 2048, %s44, [#allocation6], 128, 128, 8
    $region17: #{tpu_custom_call.1} parent=1 // pred_fallthru
      _
    // Predicated region
    $region18: #{tpu_custom_call.1} parent=1 // pred_check
      _
    $region19: #{tpu_custom_call.1} parent=1 // pred_check_branch
      %51 = sbr.rel (0) target = $region21
    $region20: #{tpu_custom_call.1} parent=1 // pred_region
      _
    $region21: #{tpu_custom_call.1} parent=1 // pred_fallthru
      _
    // Predicated region
    $region22: #{tpu_custom_call.1} parent=1 // pred_check
      _
    $region23: #{tpu_custom_call.1} parent=1 // pred_check_branch
      %53 = sbr.rel (0) target = $region25
    $region24: #{tpu_custom_call.1} parent=1 // pred_region
      %s55 = ssub.s32 10240, 10240
      %56 = vsyncadd [#allocation9], %s55
      %s57 = sshll.u32 [#allocation8], 4
      %s58 = int_to_ptr.vmem [resolvable:$true] %s57
      %63 = dma.hbm_to_vmem [thread:$0]  %s5, 10240, %s58, [#allocation9], 640, 640, 40
    $region25: #{tpu_custom_call.1} parent=1 // pred_fallthru
      _
    // Predicated region
    $region26: #{tpu_custom_call.1} parent=1 // pred_check
      _
    $region27: #{tpu_custom_call.1} parent=1 // pred_check_branch
      %65 = sbr.rel (0) target = $region29
    $region28: #{tpu_custom_call.1} parent=1 // pred_region
      _
    $region29: #{tpu_custom_call.1} parent=1 // pred_fallthru
      _
    // Predicated region
    $region30: #{tpu_custom_call.1} parent=1 // pred_check
      _
    $region31: #{tpu_custom_call.1} parent=1 // pred_check_branch
      %67 = sbr.rel (0) target = $region33
    $region32: #{tpu_custom_call.1} parent=1 // pred_region
      %68 = dma.done [#allocation3], 128
    $region33: #{tpu_custom_call.1} parent=1 // pred_fallthru
      _
    // Predicated region
    $region34: #{tpu_custom_call.1} parent=1 // pred_check
      _
    $region35: #{tpu_custom_call.1} parent=1 // pred_check_branch
      %70 = sbr.rel (0) target = $region37
    $region36: #{tpu_custom_call.1} parent=1 // pred_region
      %71 = dma.done [#allocation6], 128
    $region37: #{tpu_custom_call.1} parent=1 // pred_fallthru
      _
    // Predicated region
    $region38: #{tpu_custom_call.1} parent=1 // pred_check
      _
    $region39: #{tpu_custom_call.1} parent=1 // pred_check_branch
      %73 = sbr.rel (0) target = $region41
    $region40: #{tpu_custom_call.1} parent=1 // pred_region
      %74 = dma.done [#allocation6], 2048
    $region41: #{tpu_custom_call.1} parent=1 // pred_fallthru
      _
    // Predicated region
    $region42: #{tpu_custom_call.1} parent=1 // pred_check
      _
    $region43: #{tpu_custom_call.1} parent=1 // pred_check_branch
      %76 = sbr.rel (0) target = $region45
    $region44: #{tpu_custom_call.1} parent=1 // pred_region
      %77 = dma.done [#allocation9], 10240
    $region45: #{tpu_custom_call.1} parent=1 // pred_fallthru
      _
    %v78 = vld [vmem:[#allocation2] sm:$0xff]
    %v79 = vld [vmem:[#allocation5] sm:$0xff]
    %v80 = vld [vmem:[%s2] sm:$0x1]
    %v82 = vlaneseq
    %v83 = vshrl.u32 %v82, 7
    %v84 = vsub.s32 0, %v83
    %v85 = vrot.slane %v80, %v84
    %vm87 = vcmask 64512
    %v89 = vsel %vm87, %v78, 0
    %91 = vmatprep.subr.mxu0 0.0
    %92 = vmatpush1.msra.mxu0 %v79
    %93 = vmatprep.subr.mxu0 0.0
    %94 = vmatpush1.msra.mxu0 0.0
    %95 = vmatprep.subr.mxu0 0.0
    %96 = vmatpush1.msra.mxu0 0.0
    %97 = vmatprep.subr.mxu0 0.0
    %98 = vmatpush1.msra.mxu0 0.0
    %99 = vmatprep.subr.mxu0 0.0
    %100 = vmatpush1.msra.mxu0 0.0
    %101 = vmatprep.subr.mxu0 0.0
    %102 = vmatpush1.msra.mxu0 0.0
    %103 = vmatprep.subr.mxu0 0.0
    %104 = vmatpush1.msra.mxu0 0.0
    %105 = vmatprep.subr.mxu0 0.0
    %106 = vmatpush1.msra.mxu0 0.0
    %107 = vmatprep.subr.mxu0 0.0
    %108 = vmatpush1.msra.mxu0 0.0
    %109 = vmatprep.subr.mxu0 0.0
    %110 = vmatpush1.msra.mxu0 0.0
    %111 = vmatprep.subr.mxu0 0.0
    %112 = vmatpush1.msra.mxu0 0.0
    %113 = vmatprep.subr.mxu0 0.0
    %114 = vmatpush1.msra.mxu0 0.0
    %115 = vmatprep.subr.mxu0 0.0
    %116 = vmatpush1.msra.mxu0 0.0
    %117 = vmatprep.subr.mxu0 0.0
    %118 = vmatpush1.msra.mxu0 0.0
    %119 = vmatprep.subr.mxu0 0.0
    %120 = vmatpush1.msra.mxu0 0.0
    %121 = vmatprep.subr.mxu0 0.0
    %122 = vmatpush1.msra.mxu0 0.0
    %123 = vmatprep.subr.mxu0 0.0
    %124 = vmatpush1.msra.mxu0 0.0
    %125 = vmatprep.subr.mxu0 0.0
    %126 = vmatpush1.msra.mxu0 0.0
    %127 = vmatprep.subr.mxu0 0.0
    %128 = vmatpush1.msra.mxu0 0.0
    %129 = vmatprep.subr.mxu0 0.0
    %130 = vmatpush1.msra.mxu0 0.0
    %131 = vmatprep.subr.mxu0 0.0
    %132 = vmatpush1.msra.mxu0 0.0
    %133 = vmatprep.subr.mxu0 0.0
    %134 = vmatpush1.msra.mxu0 0.0
    %135 = vmatprep.subr.mxu0 0.0
    %136 = vmatpush1.msra.mxu0 0.0
    %137 = vmatprep.subr.mxu0 0.0
    %138 = vmatpush1.msra.mxu0 0.0
    %139 = vmatprep.subr.mxu0 0.0
    %140 = vmatpush1.msra.mxu0 0.0
    %141 = vmatprep.subr.mxu0 0.0
    %142 = vmatpush1.msra.mxu0 0.0
    %143 = vmatprep.subr.mxu0 0.0
    %144 = vmatpush1.msra.mxu0 0.0
    %145 = vmatprep.subr.mxu0 0.0
    %146 = vmatpush1.msra.mxu0 0.0
    %147 = vmatprep.subr.mxu0 0.0
    %148 = vmatpush1.msra.mxu0 0.0
    %149 = vmatprep.subr.mxu0 0.0
    %150 = vmatpush1.msra.mxu0 0.0
    %151 = vmatprep.subr.mxu0 0.0
    %152 = vmatpush1.msra.mxu0 0.0
    %153 = vmatprep.subr.mxu0 0.0
    %154 = vmatpush1.msra.mxu0 0.0
    %155 = vmatprep.mubr.f32.mxu0 0.0
    %156 = vmatmul.mubr.f32.gmra.mrb[0].mxu0 %v89
    %v157 = vpop.f32.mrb[0].mxu0
    %v158 = vadd.f32 %v85, %v157
    %v159 = vpop.f32.mrb[0].mxu0
    %160 = vdwg.mxu0
    %v161 = vmax.f32 %v158, 0.0
    %v162 = vld [vmem:[#allocation7] sm:$0xff]
    %v163 = vld [vmem:[#allocation7 + $0x8] sm:$0xff]
    %v164 = vld [vmem:[#allocation7 + $0x10] sm:$0xff]
    %v165 = vld [vmem:[#allocation7 + $0x18] sm:$0xff]
    %v166 = vld [vmem:[#allocation7 + $0x20] sm:$0xff]
    %v167 = vld [vmem:[#allocation7 + $0x28] sm:$0xff]
    %v168 = vld [vmem:[#allocation7 + $0x30] sm:$0xff]
    %v169 = vld [vmem:[#allocation7 + $0x38] sm:$0xff]
    %v170 = vld [vmem:[#allocation7 + $0x40] sm:$0xff]
    %v171 = vld [vmem:[#allocation7 + $0x48] sm:$0xff]
    %v172 = vld [vmem:[#allocation7 + $0x50] sm:$0xff]
    %v173 = vld [vmem:[#allocation7 + $0x58] sm:$0xff]
    %v174 = vld [vmem:[#allocation7 + $0x60] sm:$0xff]
    %v175 = vld [vmem:[#allocation7 + $0x68] sm:$0xff]
    %v176 = vld [vmem:[#allocation7 + $0x70] sm:$0xff]
    %v177 = vld [vmem:[#allocation7 + $0x78] sm:$0xff]
    %v178 = vld [vmem:[%s4] sm:$0x1]
    %v180 = vlaneseq
    %v181 = vshrl.u32 %v180, 7
    %v182 = vsub.s32 0, %v181
    %v183 = vrot.slane %v178, %v182
    %185 = vmatprep.subr.mxu0 0.0
    %186 = vmatpush1.msra.mxu0 %v162
    %187 = vmatprep.subr.mxu0 0.0
    %188 = vmatpush1.msra.mxu0 %v163
    %189 = vmatprep.subr.mxu0 0.0
    %190 = vmatpush1.msra.mxu0 %v164
    %191 = vmatprep.subr.mxu0 0.0
    %192 = vmatpush1.msra.mxu0 %v165
    %193 = vmatprep.subr.mxu0 0.0
    %194 = vmatpush1.msra.mxu0 %v166
    %195 = vmatprep.subr.mxu0 0.0
    %196 = vmatpush1.msra.mxu0 %v167
    %197 = vmatprep.subr.mxu0 0.0
    %198 = vmatpush1.msra.mxu0 %v168
    %199 = vmatprep.subr.mxu0 0.0
    %200 = vmatpush1.msra.mxu0 %v169
    %201 = vmatprep.subr.mxu0 0.0
    %202 = vmatpush1.msra.mxu0 %v170
    %203 = vmatprep.subr.mxu0 0.0
    %204 = vmatpush1.msra.mxu0 %v171
    %205 = vmatprep.subr.mxu0 0.0
    %206 = vmatpush1.msra.mxu0 %v172
    %207 = vmatprep.subr.mxu0 0.0
    %208 = vmatpush1.msra.mxu0 %v173
    %209 = vmatprep.subr.mxu0 0.0
    %210 = vmatpush1.msra.mxu0 %v174
    %211 = vmatprep.subr.mxu0 0.0
    %212 = vmatpush1.msra.mxu0 %v175
    %213 = vmatprep.subr.mxu0 0.0
    %214 = vmatpush1.msra.mxu0 %v176
    %215 = vmatprep.subr.mxu0 0.0
    %216 = vmatpush1.msra.mxu0 %v177
    %217 = vmatprep.subr.mxu0 0.0
    %218 = vmatpush1.msra.mxu0 0.0
    %219 = vmatprep.subr.mxu0 0.0
    %220 = vmatpush1.msra.mxu0 0.0
    %221 = vmatprep.subr.mxu0 0.0
    %222 = vmatpush1.msra.mxu0 0.0
    %223 = vmatprep.subr.mxu0 0.0
    %224 = vmatpush1.msra.mxu0 0.0
    %225 = vmatprep.subr.mxu0 0.0
    %226 = vmatpush1.msra.mxu0 0.0
    %227 = vmatprep.subr.mxu0 0.0
    %228 = vmatpush1.msra.mxu0 0.0
    %229 = vmatprep.subr.mxu0 0.0
    %230 = vmatpush1.msra.mxu0 0.0
    %231 = vmatprep.subr.mxu0 0.0
    %232 = vmatpush1.msra.mxu0 0.0
    %233 = vmatprep.subr.mxu0 0.0
    %234 = vmatpush1.msra.mxu0 0.0
    %235 = vmatprep.subr.mxu0 0.0
    %236 = vmatpush1.msra.mxu0 0.0
    %237 = vmatprep.subr.mxu0 0.0
    %238 = vmatpush1.msra.mxu0 0.0
    %239 = vmatprep.subr.mxu0 0.0
    %240 = vmatpush1.msra.mxu0 0.0
    %241 = vmatprep.subr.mxu0 0.0
    %242 = vmatpush1.msra.mxu0 0.0
    %243 = vmatprep.subr.mxu0 0.0
    %244 = vmatpush1.msra.mxu0 0.0
    %245 = vmatprep.subr.mxu0 0.0
    %246 = vmatpush1.msra.mxu0 0.0
    %247 = vmatprep.subr.mxu0 0.0
    %248 = vmatpush1.msra.mxu0 0.0
    %249 = vmatprep.mubr.f32.mxu0 0.0
    %250 = vmatmul.mubr.f32.gmra.mrb[0].mxu0 %v161
    %v251 = vpop.f32.mrb[0].mxu0
    %v252 = vadd.f32 %v183, %v251
    %v253 = vpop.f32.mrb[0].mxu0
    %254 = vdwg.mxu0
    %v255 = vmax.f32 %v252, 0.0
    %v256 = vld [vmem:[#allocation8] sm:$0xff]
    %v257 = vld [vmem:[#allocation8 + $0x8] sm:$0xff]
    %v258 = vld [vmem:[#allocation8 + $0x10] sm:$0xff]
    %v259 = vld [vmem:[#allocation8 + $0x18] sm:$0xff]
    %v260 = vld [vmem:[#allocation8 + $0x20] sm:$0xff]
    %v261 = vld [vmem:[#allocation8 + $0x28] sm:$0xff]
    %v262 = vld [vmem:[#allocation8 + $0x30] sm:$0xff]
    %v263 = vld [vmem:[#allocation8 + $0x38] sm:$0xff]
    %v264 = vld [vmem:[#allocation8 + $0x40] sm:$0xff]
    %v265 = vld [vmem:[#allocation8 + $0x48] sm:$0xff]
    %v266 = vld [vmem:[#allocation8 + $0x50] sm:$0xff]
    %v267 = vld [vmem:[#allocation8 + $0x58] sm:$0xff]
    %v268 = vld [vmem:[#allocation8 + $0x60] sm:$0xff]
    %v269 = vld [vmem:[#allocation8 + $0x68] sm:$0xff]
    %v270 = vld [vmem:[#allocation8 + $0x70] sm:$0xff]
    %v271 = vld [vmem:[#allocation8 + $0x78] sm:$0xff]
    %v272 = vld [vmem:[#allocation8 + $0x80] sm:$0xff]
    %v273 = vld [vmem:[#allocation8 + $0x88] sm:$0xff]
    %v274 = vld [vmem:[#allocation8 + $0x90] sm:$0xff]
    %v275 = vld [vmem:[#allocation8 + $0x98] sm:$0xff]
    %v276 = vld [vmem:[#allocation8 + $0xa0] sm:$0xff]
    %v277 = vld [vmem:[#allocation8 + $0xa8] sm:$0xff]
    %v278 = vld [vmem:[#allocation8 + $0xb0] sm:$0xff]
    %v279 = vld [vmem:[#allocation8 + $0xb8] sm:$0xff]
    %v280 = vld [vmem:[#allocation8 + $0xc0] sm:$0xff]
    %v281 = vld [vmem:[#allocation8 + $0xc8] sm:$0xff]
    %v282 = vld [vmem:[#allocation8 + $0xd0] sm:$0xff]
    %v283 = vld [vmem:[#allocation8 + $0xd8] sm:$0xff]
    %v284 = vld [vmem:[#allocation8 + $0xe0] sm:$0xff]
    %v285 = vld [vmem:[#allocation8 + $0xe8] sm:$0xff]
    %v286 = vld [vmem:[#allocation8 + $0xf0] sm:$0xff]
    %v287 = vld [vmem:[#allocation8 + $0xf8] sm:$0xff]
    %v288 = vld [vmem:[#allocation8 + $0x100] sm:$0xff]
    %v289 = vld [vmem:[#allocation8 + $0x108] sm:$0xff]
    %v290 = vld [vmem:[#allocation8 + $0x110] sm:$0xff]
    %v291 = vld [vmem:[#allocation8 + $0x118] sm:$0xff]
    %v292 = vld [vmem:[#allocation8 + $0x120] sm:$0xff]
    %v293 = vld [vmem:[#allocation8 + $0x128] sm:$0xff]
    %v294 = vld [vmem:[#allocation8 + $0x130] sm:$0xff]
    %v295 = vld [vmem:[#allocation8 + $0x138] sm:$0xff]
    %v296 = vld [vmem:[#allocation8 + $0x140] sm:$0xff]
    %v297 = vld [vmem:[#allocation8 + $0x148] sm:$0xff]
    %v298 = vld [vmem:[#allocation8 + $0x150] sm:$0xff]
    %v299 = vld [vmem:[#allocation8 + $0x158] sm:$0xff]
    %v300 = vld [vmem:[#allocation8 + $0x160] sm:$0xff]
    %v301 = vld [vmem:[#allocation8 + $0x168] sm:$0xff]
    %v302 = vld [vmem:[#allocation8 + $0x170] sm:$0xff]
    %v303 = vld [vmem:[#allocation8 + $0x178] sm:$0xff]
    %v304 = vld [vmem:[#allocation8 + $0x180] sm:$0xff]
    %v305 = vld [vmem:[#allocation8 + $0x188] sm:$0xff]
    %v306 = vld [vmem:[#allocation8 + $0x190] sm:$0xff]
    %v307 = vld [vmem:[#allocation8 + $0x198] sm:$0xff]
    %v308 = vld [vmem:[#allocation8 + $0x1a0] sm:$0xff]
    %v309 = vld [vmem:[#allocation8 + $0x1a8] sm:$0xff]
    %v310 = vld [vmem:[#allocation8 + $0x1b0] sm:$0xff]
    %v311 = vld [vmem:[#allocation8 + $0x1b8] sm:$0xff]
    %v312 = vld [vmem:[#allocation8 + $0x1c0] sm:$0xff]
    %v313 = vld [vmem:[#allocation8 + $0x1c8] sm:$0xff]
    %v314 = vld [vmem:[#allocation8 + $0x1d0] sm:$0xff]
    %v315 = vld [vmem:[#allocation8 + $0x1d8] sm:$0xff]
    %v316 = vld [vmem:[#allocation8 + $0x1e0] sm:$0xff]
    %v317 = vld [vmem:[#allocation8 + $0x1e8] sm:$0xff]
    %v318 = vld [vmem:[#allocation8 + $0x1f0] sm:$0xff]
    %v319 = vld [vmem:[#allocation8 + $0x1f8] sm:$0xff]
    %v320 = vld [vmem:[#allocation8 + $0x200] sm:$0xff]
    %v321 = vld [vmem:[#allocation8 + $0x208] sm:$0xff]
    %v322 = vld [vmem:[#allocation8 + $0x210] sm:$0xff]
    %v323 = vld [vmem:[#allocation8 + $0x218] sm:$0xff]
    %v324 = vld [vmem:[#allocation8 + $0x220] sm:$0xff]
    %v325 = vld [vmem:[#allocation8 + $0x228] sm:$0xff]
    %v326 = vld [vmem:[#allocation8 + $0x230] sm:$0xff]
    %v327 = vld [vmem:[#allocation8 + $0x238] sm:$0xff]
    %v328 = vld [vmem:[#allocation8 + $0x240] sm:$0xff]
    %v329 = vld [vmem:[#allocation8 + $0x248] sm:$0xff]
    %v330 = vld [vmem:[#allocation8 + $0x250] sm:$0xff]
    %v331 = vld [vmem:[#allocation8 + $0x258] sm:$0xff]
    %v332 = vld [vmem:[#allocation8 + $0x260] sm:$0xff]
    %v333 = vld [vmem:[#allocation8 + $0x268] sm:$0xff]
    %v334 = vld [vmem:[#allocation8 + $0x270] sm:$0xff]
    %v335 = vld [vmem:[#allocation8 + $0x278] sm:$0xff]
    %v336 = vld [vmem:[%s6] sm:$0x1f]
    %v338 = vlaneseq
    %v339 = vshrl.u32 %v338, 7
    %v340 = vsub.s32 0, %v339
    %v341 = vrot.slane %v336, %v340
    %v342 = vlaneseq
    %v343 = vshrl.u32 %v342, 7
    %v344 = vsub.s32 1, %v343
    %v345 = vrot.slane %v336, %v344
    %v346 = vlaneseq
    %v347 = vshrl.u32 %v346, 7
    %v348 = vsub.s32 2, %v347
    %v349 = vrot.slane %v336, %v348
    %v350 = vlaneseq
    %v351 = vshrl.u32 %v350, 7
    %v352 = vsub.s32 3, %v351
    %v353 = vrot.slane %v336, %v352
    %v354 = vlaneseq
    %v355 = vshrl.u32 %v354, 7
    %v356 = vsub.s32 4, %v355
    %v357 = vrot.slane %v336, %v356
    %363 = vmatprep.subr.mxu0 %v257
    %364 = vmatpush1.msra.mxu0 %v256
    %365 = vmatprep.subr.mxu0 %v262
    %366 = vmatpush1.msra.mxu0 %v261
    %367 = vmatprep.subr.mxu0 %v267
    %368 = vmatpush1.msra.mxu0 %v266
    %369 = vmatprep.subr.mxu0 %v272
    %370 = vmatpush1.msra.mxu0 %v271
    %371 = vmatprep.subr.mxu0 %v277
    %372 = vmatpush1.msra.mxu0 %v276
    %373 = vmatprep.subr.mxu0 %v282
    %374 = vmatpush1.msra.mxu0 %v281
    %375 = vmatprep.subr.mxu0 %v287
    %376 = vmatpush1.msra.mxu0 %v286
    %377 = vmatprep.subr.mxu0 %v292
    %378 = vmatpush1.msra.mxu0 %v291
    %379 = vmatprep.subr.mxu0 %v297
    %380 = vmatpush1.msra.mxu0 %v296
    %381 = vmatprep.subr.mxu0 %v302
    %382 = vmatpush1.msra.mxu0 %v301
    %383 = vmatprep.subr.mxu0 %v307
    %384 = vmatpush1.msra.mxu0 %v306
    %385 = vmatprep.subr.mxu0 %v312
    %386 = vmatpush1.msra.mxu0 %v311
    %387 = vmatprep.subr.mxu0 %v317
    %388 = vmatpush1.msra.mxu0 %v316
    %389 = vmatprep.subr.mxu0 %v322
    %390 = vmatpush1.msra.mxu0 %v321
    %391 = vmatprep.subr.mxu0 %v327
    %392 = vmatpush1.msra.mxu0 %v326
    %393 = vmatprep.subr.mxu0 %v332
    %394 = vmatpush1.msra.mxu0 %v331
    %395 = vmatprep.subr.mxu0 0.0
    %396 = vmatpush1.msra.mxu0 0.0
    %397 = vmatprep.subr.mxu0 0.0
    %398 = vmatpush1.msra.mxu0 0.0
    %399 = vmatprep.subr.mxu0 0.0
    %400 = vmatpush1.msra.mxu0 0.0
    %401 = vmatprep.subr.mxu0 0.0
    %402 = vmatpush1.msra.mxu0 0.0
    %403 = vmatprep.subr.mxu0 0.0
    %404 = vmatpush1.msra.mxu0 0.0
    %405 = vmatprep.subr.mxu0 0.0
    %406 = vmatpush1.msra.mxu0 0.0
    %407 = vmatprep.subr.mxu0 0.0
    %408 = vmatpush1.msra.mxu0 0.0
    %409 = vmatprep.subr.mxu0 0.0
    %410 = vmatpush1.msra.mxu0 0.0
    %411 = vmatprep.subr.mxu0 0.0
    %412 = vmatpush1.msra.mxu0 0.0
    %413 = vmatprep.subr.mxu0 0.0
    %414 = vmatpush1.msra.mxu0 0.0
    %415 = vmatprep.subr.mxu0 0.0
    %416 = vmatpush1.msra.mxu0 0.0
    %417 = vmatprep.subr.mxu0 0.0
    %418 = vmatpush1.msra.mxu0 0.0
    %419 = vmatprep.subr.mxu0 0.0
    %420 = vmatpush1.msra.mxu0 0.0
    %421 = vmatprep.subr.mxu0 0.0
    %422 = vmatpush1.msra.mxu0 0.0
    %423 = vmatprep.subr.mxu0 0.0
    %424 = vmatpush1.msra.mxu0 0.0
    %425 = vmatprep.subr.mxu0 0.0
    %426 = vmatpush1.msra.mxu0 0.0
    %427 = vmatprep.mubr.f32.mxu0 0.0
    %428 = vmatmul.mubr.f32.gmra.mrb[0].mxu0 %v255
    %v429 = vpop.f32.mrb[0].mxu0
    %v430 = vadd.f32 %v341, %v429
    %v431 = vpop.f32.mrb[0].mxu0
    %v432 = vadd.f32 %v345, %v431
    %433 = vdwg.mxu0
    %434 = vmatprep.subr.mxu0 %v259
    %435 = vmatpush1.msra.mxu0 %v258
    %436 = vmatprep.subr.mxu0 %v264
    %437 = vmatpush1.msra.mxu0 %v263
    %438 = vmatprep.subr.mxu0 %v269
    %439 = vmatpush1.msra.mxu0 %v268
    %440 = vmatprep.subr.mxu0 %v274
    %441 = vmatpush1.msra.mxu0 %v273
    %442 = vmatprep.subr.mxu0 %v279
    %443 = vmatpush1.msra.mxu0 %v278
    %444 = vmatprep.subr.mxu0 %v284
    %445 = vmatpush1.msra.mxu0 %v283
    %446 = vmatprep.subr.mxu0 %v289
    %447 = vmatpush1.msra.mxu0 %v288
    %448 = vmatprep.subr.mxu0 %v294
    %449 = vmatpush1.msra.mxu0 %v293
    %450 = vmatprep.subr.mxu0 %v299
    %451 = vmatpush1.msra.mxu0 %v298
    %452 = vmatprep.subr.mxu0 %v304
    %453 = vmatpush1.msra.mxu0 %v303
    %454 = vmatprep.subr.mxu0 %v309
    %455 = vmatpush1.msra.mxu0 %v308
    %456 = vmatprep.subr.mxu0 %v314
    %457 = vmatpush1.msra.mxu0 %v313
    %458 = vmatprep.subr.mxu0 %v319
    %459 = vmatpush1.msra.mxu0 %v318
    %460 = vmatprep.subr.mxu0 %v324
    %461 = vmatpush1.msra.mxu0 %v323
    %462 = vmatprep.subr.mxu0 %v329
    %463 = vmatpush1.msra.mxu0 %v328
    %464 = vmatprep.subr.mxu0 %v334
    %465 = vmatpush1.msra.mxu0 %v333
    %466 = vmatprep.subr.mxu0 0.0
    %467 = vmatpush1.msra.mxu0 0.0
    %468 = vmatprep.subr.mxu0 0.0
    %469 = vmatpush1.msra.mxu0 0.0
    %470 = vmatprep.subr.mxu0 0.0
    %471 = vmatpush1.msra.mxu0 0.0
    %472 = vmatprep.subr.mxu0 0.0
    %473 = vmatpush1.msra.mxu0 0.0
    %474 = vmatprep.subr.mxu0 0.0
    %475 = vmatpush1.msra.mxu0 0.0
    %476 = vmatprep.subr.mxu0 0.0
    %477 = vmatpush1.msra.mxu0 0.0
    %478 = vmatprep.subr.mxu0 0.0
    %479 = vmatpush1.msra.mxu0 0.0
    %480 = vmatprep.subr.mxu0 0.0
    %481 = vmatpush1.msra.mxu0 0.0
    %482 = vmatprep.subr.mxu0 0.0
    %483 = vmatpush1.msra.mxu0 0.0
    %484 = vmatprep.subr.mxu0 0.0
    %485 = vmatpush1.msra.mxu0 0.0
    %486 = vmatprep.subr.mxu0 0.0
    %487 = vmatpush1.msra.mxu0 0.0
    %488 = vmatprep.subr.mxu0 0.0
    %489 = vmatpush1.msra.mxu0 0.0
    %490 = vmatprep.subr.mxu0 0.0
    %491 = vmatpush1.msra.mxu0 0.0
    %492 = vmatprep.subr.mxu0 0.0
    %493 = vmatpush1.msra.mxu0 0.0
    %494 = vmatprep.subr.mxu0 0.0
    %495 = vmatpush1.msra.mxu0 0.0
    %496 = vmatprep.subr.mxu0 0.0
    %497 = vmatpush1.msra.mxu0 0.0
    %498 = vmatprep.mubr.f32.mxu0 0.0
    %499 = vmatmul.mubr.f32.gmra.mrb[0].mxu0 %v255
    %v500 = vpop.f32.mrb[0].mxu0
    %v501 = vadd.f32 %v349, %v500
    %v502 = vpop.f32.mrb[0].mxu0
    %v503 = vadd.f32 %v353, %v502
    %504 = vdwg.mxu0
    %505 = vmatprep.subr.mxu0 0.0
    %506 = vmatpush1.msra.mxu0 %v260
    %507 = vmatprep.subr.mxu0 0.0
    %508 = vmatpush1.msra.mxu0 %v265
    %509 = vmatprep.subr.mxu0 0.0
    %510 = vmatpush1.msra.mxu0 %v270
    %511 = vmatprep.subr.mxu0 0.0
    %512 = vmatpush1.msra.mxu0 %v275
    %513 = vmatprep.subr.mxu0 0.0
    %514 = vmatpush1.msra.mxu0 %v280
    %515 = vmatprep.subr.mxu0 0.0
    %516 = vmatpush1.msra.mxu0 %v285
    %517 = vmatprep.subr.mxu0 0.0
    %518 = vmatpush1.msra.mxu0 %v290
    %519 = vmatprep.subr.mxu0 0.0
    %520 = vmatpush1.msra.mxu0 %v295
    %521 = vmatprep.subr.mxu0 0.0
    %522 = vmatpush1.msra.mxu0 %v300
    %523 = vmatprep.subr.mxu0 0.0
    %524 = vmatpush1.msra.mxu0 %v305
    %525 = vmatprep.subr.mxu0 0.0
    %526 = vmatpush1.msra.mxu0 %v310
    %527 = vmatprep.subr.mxu0 0.0
    %528 = vmatpush1.msra.mxu0 %v315
    %529 = vmatprep.subr.mxu0 0.0
    %530 = vmatpush1.msra.mxu0 %v320
    %531 = vmatprep.subr.mxu0 0.0
    %532 = vmatpush1.msra.mxu0 %v325
    %533 = vmatprep.subr.mxu0 0.0
    %534 = vmatpush1.msra.mxu0 %v330
    %535 = vmatprep.subr.mxu0 0.0
    %536 = vmatpush1.msra.mxu0 %v335
    %537 = vmatprep.subr.mxu0 0.0
    %538 = vmatpush1.msra.mxu0 0.0
    %539 = vmatprep.subr.mxu0 0.0
    %540 = vmatpush1.msra.mxu0 0.0
    %541 = vmatprep.subr.mxu0 0.0
    %542 = vmatpush1.msra.mxu0 0.0
    %543 = vmatprep.subr.mxu0 0.0
    %544 = vmatpush1.msra.mxu0 0.0
    %545 = vmatprep.subr.mxu0 0.0
    %546 = vmatpush1.msra.mxu0 0.0
    %547 = vmatprep.subr.mxu0 0.0
    %548 = vmatpush1.msra.mxu0 0.0
    %549 = vmatprep.subr.mxu0 0.0
    %550 = vmatpush1.msra.mxu0 0.0
    %551 = vmatprep.subr.mxu0 0.0
    %552 = vmatpush1.msra.mxu0 0.0
    %553 = vmatprep.subr.mxu0 0.0
    %554 = vmatpush1.msra.mxu0 0.0
    %555 = vmatprep.subr.mxu0 0.0
    %556 = vmatpush1.msra.mxu0 0.0
    %557 = vmatprep.subr.mxu0 0.0
    %558 = vmatpush1.msra.mxu0 0.0
    %559 = vmatprep.subr.mxu0 0.0
    %560 = vmatpush1.msra.mxu0 0.0
    %561 = vmatprep.subr.mxu0 0.0
    %562 = vmatpush1.msra.mxu0 0.0
    %563 = vmatprep.subr.mxu0 0.0
    %564 = vmatpush1.msra.mxu0 0.0
    %565 = vmatprep.subr.mxu0 0.0
    %566 = vmatpush1.msra.mxu0 0.0
    %567 = vmatprep.subr.mxu0 0.0
    %568 = vmatpush1.msra.mxu0 0.0
    %569 = vmatprep.mubr.f32.mxu0 0.0
    %570 = vmatmul.mubr.f32.gmra.mrb[0].mxu0 %v255
    %v571 = vpop.f32.mrb[0].mxu0
    %v572 = vadd.f32 %v357, %v571
    %v573 = vpop.f32.mrb[0].mxu0
    %574 = vdwg.mxu0
    %v575 = vadd.f32 %v430, %v432
    %v576 = vadd.f32 %v575, %v501
    %v577 = vadd.f32 %v576, %v503
    %v578 = vmul.f32 %v577, 0.25
    %v579 = vadd.f32 %v572, %v430
    %v580 = vsub.f32 %v579, %v578
    %581 = vmax.xlane.f32.xlu0 %v580
    %v582 = vpop.xlane.xlu0 %581
    %v583 = vsub.f32 %v580, %v582
    %v584 = vmul.f32 %v583, 1.442695
    %v585 = vpow.pop %v584
    %586 = vadd.xlane.f32.xlu0 %v585
    %v587 = vpop.xlane.xlu0 %586
    %v588 = vrcp.pop %v587
    %v589 = vmul.f32 %v585, %v588
    %590 = vst [vmem:[#allocation10] sm:$0xff] %v589
    %v591 = vadd.f32 %v572, %v432
    %v592 = vsub.f32 %v591, %v578
    %593 = vmax.xlane.f32.xlu0 %v592
    %v594 = vpop.xlane.xlu0 %593
    %v595 = vsub.f32 %v592, %v594
    %v596 = vmul.f32 %v595, 1.442695
    %v597 = vpow.pop %v596
    %598 = vadd.xlane.f32.xlu0 %v597
    %v599 = vpop.xlane.xlu0 %598
    %v600 = vrcp.pop %v599
    %v601 = vmul.f32 %v597, %v600
    %602 = vst [vmem:[#allocation10 + $0x8] sm:$0xff] %v601
    %v603 = vadd.f32 %v572, %v501
    %v604 = vsub.f32 %v603, %v578
    %605 = vmax.xlane.f32.xlu0 %v604
    %v606 = vpop.xlane.xlu0 %605
    %v607 = vsub.f32 %v604, %v606
    %v608 = vmul.f32 %v607, 1.442695
    %v609 = vpow.pop %v608
    %610 = vadd.xlane.f32.xlu0 %v609
    %v611 = vpop.xlane.xlu0 %610
    %v612 = vrcp.pop %v611
    %v613 = vmul.f32 %v609, %v612
    %614 = vst [vmem:[#allocation10 + $0x10] sm:$0xff] %v613
    %v615 = vadd.f32 %v572, %v503
    %v616 = vsub.f32 %v615, %v578
    %617 = vmax.xlane.f32.xlu0 %v616
    %v618 = vpop.xlane.xlu0 %617
    %v619 = vsub.f32 %v616, %v618
    %v620 = vmul.f32 %v619, 1.442695
    %v621 = vpow.pop %v620
    %622 = vadd.xlane.f32.xlu0 %v621
    %v623 = vpop.xlane.xlu0 %622
    %v624 = vrcp.pop %v623
    %v625 = vmul.f32 %v621, %v624
    %626 = vst [vmem:[#allocation10 + $0x18] sm:$0xff] %v625
    // Predicated region
    $region46: #{tpu_custom_call.1} parent=1 // pred_check
      _
    $region47: #{tpu_custom_call.1} parent=1 // pred_check_branch
      %628 = sbr.rel (0) target = $region49
    $region48: #{tpu_custom_call.1} parent=1 // pred_region
      %s630 = ssub.s32 512, 512
      %631 = vsyncadd [#allocation4], %s630
      %s633 = sshll.u32 [#allocation10], 4
      %s634 = int_to_ptr.vmem [resolvable:$true] %s633
      %636 = dma.vmem_to_hbm [thread:$0]  %s634, 512, %s7, [#allocation4]
    $region49: #{tpu_custom_call.1} parent=1 // pred_fallthru
      _
    // Predicated region
    $region50: #{tpu_custom_call.1} parent=1 // pred_check
      _
    $region51: #{tpu_custom_call.1} parent=1 // pred_check_branch
      %638 = sbr.rel (0) target = $region53
    $region52: #{tpu_custom_call.1} parent=1 // pred_region
      %639 = dma.done [#allocation4], 512
    $region53: #{tpu_custom_call.1} parent=1 // pred_fallthru
      _
    %640 = vsyncpa [#allocation3], 1
    %641 = vsyncpa [#allocation6], 1
    %642 = vsyncpa [#allocation9], 1
    %643 = vsyncpa [#allocation4], 1

</llo_original>
